<compile_context>
chip_gen: v6e
topology: v6e:2x2x1
jax: 0.10.0
libtpu: 0.0.40
codegen_flags: <defaults>
</compile_context>

<pallas_src>
import jax
import jax.numpy as jnp
from jax.experimental import pallas as pl
from jax.experimental.pallas import tpu as pltpu

IGNORE_LABEL = 255
GAMMA = 2.0  # implemented as f*f (exact square, no pow lowering through exp/log)


def _round_up(x, m):
    return ((x + m - 1) // m) * m


def _tile_and_pad(dim, target, align):
    """Pick an `align`-multiple tile <= ~target and the padded dim it divides evenly."""
    dim_al = _round_up(dim, align)
    target_al = max((target // align) * align, align)
    steps = -(-dim_al // target_al)                 # cdiv
    tile = _round_up(-(-dim_al // steps), align)
    return tile, tile * steps


def _largest_divisor_le(n, cap):
    cap = max(1, min(n, cap))
    for d in range(cap, 0, -1):
        if n % d == 0:
            return d
    return 1


# ----------------------------------------------------------------------------
# Kernel 1: tiled linear "net" head  (N, F)bf16 @ (F, OUT)bf16 + b -> (N, OUT)bf16
# ----------------------------------------------------------------------------
def linear_head_kernel(x_ref, w_ref, b_ref, o_ref, acc_ref):
    @pl.when(pl.program_id(2) == 0)
    def _init():
        acc_ref[...] = jnp.zeros_like(acc_ref)

    acc_ref[...] += jnp.dot(x_ref[...], w_ref[...],
                            preferred_element_type=jnp.float32)

    @pl.when(pl.program_id(2) == pl.num_programs(2) - 1)
    def _finalize():
        o_ref[...] = (acc_ref[...] + b_ref[...]).astype(o_ref.dtype)


def linear_head(x_bf16, w_bf16, b_f32, *,
                tm_target=512, tn_target=512, tk_target=2048):
    n, f = x_bf16.shape
    f2, out = w_bf16.shape
    assert f == f2

    tm, pn = _tile_and_pad(n, tm_target, 8)
    tk, pk = _tile_and_pad(f, tk_target, 128)
    tn, po = _tile_and_pad(out, tn_target, 128)

    # v7x megacore: guarantee at least one "parallel" grid axis has >= 2 steps,
    # otherwise the second TensorCore idles on small (N, OUT) problems.
    while (pn // tm) * (po // tn) < 2 and tn > 128:
        tn, po = _tile_and_pad(out, tn // 2, 128)

    # Zero-pad to tile multiples (zeros in K contribute nothing; padded M/N
    # rows/cols are sliced away below).
    x_p = x_bf16 if (pn == n and pk == f) else jnp.pad(x_bf16, ((0, pn - n), (0, pk - f)))
    w_p = w_bf16 if (pk == f and po == out) else jnp.pad(w_bf16, ((0, pk - f), (0, po - out)))
    b_p = b_f32 if po == out else jnp.pad(b_f32, ((0, 0), (0, po - out)))

    grid = (pn // tm, po // tn, pk // tk)

    # Double-buffered-input + bf16 output + f32 accumulator footprint; keep the
    # scoped limit comfortably above it but <= 48 MiB so it also fits v7x
    # (64 MiB physical VMEM) without starving the rest of the program.
    vmem_bytes = (2 * (tm * tk * 2 + tk * tn * 2 + tn * 4)
                  + 2 * tm * tn * 2
                  + tm * tn * 4)
    vmem_limit = int(min(48 * 2 ** 20, max(32 * 2 ** 20, 2 * vmem_bytes)))

    cost = pl.CostEstimate(
        flops=2 * pn * po * pk,
        transcendentals=0,
        bytes_accessed=pn * pk * 2 + pk * po * 2 + pn * po * 2 + po * 4,
    )

    out_padded = pl.pallas_call(
        linear_head_kernel,
        out_shape=jax.ShapeDtypeStruct((pn, po), jnp.bfloat16),
        grid_spec=pltpu.PrefetchScalarGridSpec(
            num_scalar_prefetch=0,
            grid=grid,
            in_specs=[
                pl.BlockSpec((tm, tk), lambda i, j, k: (i, k)),
                pl.BlockSpec((tk, tn), lambda i, j, k: (k, j)),
                pl.BlockSpec((1, tn), lambda i, j, k: (0, j)),
            ],
            out_specs=pl.BlockSpec((tm, tn), lambda i, j, k: (i, j)),
            scratch_shapes=[pltpu.VMEM((tm, tn), jnp.float32)],
        ),
        compiler_params=pltpu.CompilerParams(
            dimension_semantics=("parallel", "parallel", "arbitrary"),
            vmem_limit_bytes=vmem_limit,
        ),
        cost_estimate=cost,
    )(x_p, w_p, b_p)

    if pn == n and po == out:
        return out_padded
    return out_padded[:n, :out]


# ----------------------------------------------------------------------------
# Kernel 2: SoftmaxFocalLoss(gamma=2) + NLLLoss(ignore_index=255, mean)
# logits: (N, C, P) bf16 with class dim on axis 1 (native NCHW, no transpose),
# labels: (N, 1, P) int32  ->  scalar loss (1, 1) f32.
# Gridded over N in blocks of NB samples; total/count accumulate in VMEM
# scratch, single finalize write with a count>0 guard.
# ----------------------------------------------------------------------------
def focal_loss_kernel(logits_ref, labels_ref, loss_ref, total_ref, count_ref):
    step = pl.program_id(0)

    @pl.when(step == 0)
    def _init():
        total_ref[...] = jnp.zeros_like(total_ref)
        count_ref[...] = jnp.zeros_like(count_ref)

    logits = logits_ref[...].astype(jnp.float32)    # (NB, C, P): C on sublanes, P on lanes
    labels = labels_ref[...]                        # (NB, 1, P) int32
    nb, c, p = logits.shape

    # Numerically stable softmax / log-softmax over the class dim, ONE exp pass.
    m = jnp.max(logits, axis=1, keepdims=True)      # (NB, 1, P)
    z = logits - m
    e = jnp.exp(z)                                  # single EUP pass
    s = jnp.sum(e, axis=1, keepdims=True)           # (NB, 1, P)
    log_sm = z - jnp.log(s)
    sm = e * pl.reciprocal(s, approx=True)

    fac = 1.0 - sm
    weighted = fac * fac * log_sm                   # (NB, C, P)  — (1-p)^2 as f*f

    # Gather weighted[labels] via one-hot; label 255 never matches (C < 255),
    # so ignored positions contribute exactly zero (no extra valid-mask multiply).
    cls_idx = jax.lax.broadcasted_iota(jnp.int32, (nb, c, p), 1)
    onehot = (cls_idx == labels).astype(jnp.float32)            # (NB, C, P)

    total_ref[...] += -jnp.sum(weighted * onehot)
    count_ref[...] += jnp.sum((labels != IGNORE_LABEL).astype(jnp.float32))

    @pl.when(step == pl.num_programs(0) - 1)
    def _finalize():
        total = total_ref[...]
        count = count_ref[...]
        # Guard the all-ignored batch (PyTorch NLLLoss would produce NaN).
        loss_ref[...] = jnp.where(count > 0.0, total / jnp.maximum(count, 1.0), 0.0)


def softmax_focal_loss(logits_ncp, labels_np, *, block_bytes_target=2 * 2 ** 20):
    """logits: (N, C, P) bf16/f32, class dim on axis 1; labels: (N, P) int -> scalar."""
    n, c, p = logits_ncp.shape
    labels_3d = labels_np.reshape(n, 1, p).astype(jnp.int32)

    # Batch as many samples per grid step as fits the (small) VMEM budget —
    # per-sample work is tiny, so grid-step overhead dominates otherwise.
    per_sample = c * p * logits_ncp.dtype.itemsize + p * 4
    nb = _largest_divisor_le(n, max(1, block_bytes_target // max(per_sample, 1)))
    grid = (n // nb,)

    loss = pl.pallas_call(
        focal_loss_kernel,
        out_shape=jax.ShapeDtypeStruct((1, 1), jnp.float32),
        grid_spec=pltpu.PrefetchScalarGridSpec(
            num_scalar_prefetch=0,
            grid=grid,
            in_specs=[
                pl.BlockSpec((nb, c, p), lambda i: (i, 0, 0)),
                pl.BlockSpec((nb, 1, p), lambda i: (i, 0, 0)),
            ],
            out_specs=pl.BlockSpec((1, 1), lambda i: (0, 0)),
            scratch_shapes=[
                pltpu.VMEM((1, 1), jnp.float32),   # running total
                pltpu.VMEM((1, 1), jnp.float32),   # running valid count
            ],
        ),
        compiler_params=pltpu.CompilerParams(
            dimension_semantics=("arbitrary",),    # reduction into one output block
        ),
    )(logits_ncp, labels_3d)
    return loss[0, 0]


# ----------------------------------------------------------------------------
# LaneCls forward:  loss + loss_stats dict
# ----------------------------------------------------------------------------
def lane_cls_forward(params, batch, cls_shape):
    """Returns {'loss': scalar, 'loss_stats': {'cls_loss': scalar}}."""
    img = batch["img"]                                     # (N, C_img, H, W)
    n = img.shape[0]
    # bf16 activations + bf16 weights -> f32 MXU accumulation.
    x_flat = img.reshape(n, -1).astype(jnp.bfloat16)
    logits_flat = linear_head(x_flat, params["w"], params["b"])   # (N, OUT) bf16

    num_cls, rows, lanes = cls_shape
    # OUT is (num_cls, rows*lanes)-major ordered (NCHW), so this reshape is free:
    # the class dim lands on sublanes and rows*lanes on lanes for the loss kernel.
    logits_ncp = logits_flat.reshape(n, num_cls, rows * lanes)
    labels_np = batch["cls_label"].reshape(n, rows * lanes).astype(jnp.int32)

    cls_loss = softmax_focal_loss(logits_ncp, labels_np)
    loss = cls_loss
    return {"loss": loss, "loss_stats": {"cls_loss": cls_loss}}


# ----------------------------------------------------------------------------
# Pure-JAX reference (same bf16 head inputs + bf16 logits writeback) for sanity
# ----------------------------------------------------------------------------
def reference_forward(params, batch, cls_shape):
    img = batch["img"]
    n = img.shape[0]
    x_flat = img.reshape(n, -1).astype(jnp.bfloat16)
    logits_flat = jnp.dot(x_flat, params["w"],
                          preferred_element_type=jnp.float32) + params["b"]
    # Mirror the kernel path: head writes bf16 logits, loss upcasts to f32.
    logits_flat = logits_flat.astype(jnp.bfloat16).astype(jnp.float32)
    num_cls, rows, lanes = cls_shape
    logits = logits_flat.reshape(n, num_cls, rows, lanes)

    sm = jax.nn.softmax(logits, axis=1)
    log_sm = jax.nn.log_softmax(logits, axis=1)
    weighted = (1.0 - sm) ** GAMMA * log_sm
    labels = batch["cls_label"]
    valid = labels != IGNORE_LABEL
    safe_labels = jnp.where(valid, labels, 0)
    picked = jnp.take_along_axis(weighted, safe_labels[:, None, :, :], axis=1)[:, 0]
    total = -jnp.sum(picked * valid.astype(jnp.float32))
    return total / jnp.sum(valid.astype(jnp.float32))


if __name__ == "__main__":
    key = jax.random.PRNGKey(0)
    k_img, k_w, k_b, k_lbl, k_ign = jax.random.split(key, 5)

    # small shapes consistent with the module
    N, C_IMG, H, W = 2, 3, 16, 16          # input image, NCHW
    NUM_CLS, ROWS, LANES = 8, 8, 4         # cls output (N, NUM_CLS, ROWS, LANES)
    F_IN = C_IMG * H * W                   # 768
    OUT = NUM_CLS * ROWS * LANES           # 256

    img = jax.random.normal(k_img, (N, C_IMG, H, W), dtype=jnp.float32)
    w = (jax.random.normal(k_w, (F_IN, OUT), dtype=jnp.float32) * 0.02).astype(jnp.bfloat16)
    b = jax.random.normal(k_b, (1, OUT), dtype=jnp.float32) * 0.01

    labels = jax.random.randint(k_lbl, (N, ROWS, LANES), 0, NUM_CLS, dtype=jnp.int32)
    ign_mask = jax.random.uniform(k_ign, (N, ROWS, LANES)) < 0.1
    labels = jnp.where(ign_mask, IGNORE_LABEL, labels)

    params = {"w": w, "b": b}
    batch = {"img": img, "cls_label": labels}

    ret = lane_cls_forward(params, batch, (NUM_CLS, ROWS, LANES))
    loss = jax.block_until_ready(ret["loss"])

    ref = jax.block_until_ready(reference_forward(params, batch, (NUM_CLS, ROWS, LANES)))
    assert jnp.allclose(loss, ref, rtol=5e-3, atol=1e-5), (loss, ref)
    assert jnp.allclose(ret["loss_stats"]["cls_loss"], ref, rtol=5e-3, atol=1e-5)

    print("KERNEL_OK")
</pallas_src>

<mosaic_0001>
module attributes {stable_mosaic.version = 11 : i64} {
  func.func @linear_head_kernel(%arg0: i32, %arg1: i32, %arg2: i32, %arg3: memref<8x768xbf16, #tpu.memory_space<vmem>>, %arg4: memref<768x128xbf16, #tpu.memory_space<vmem>>, %arg5: memref<1x128xf32, #tpu.memory_space<vmem>>, %arg6: memref<8x128xbf16, #tpu.memory_space<vmem>>, %arg7: memref<8x128xf32, #tpu.memory_space<vmem>>) attributes {dimension_semantics = [#tpu.dimension_semantics<parallel>, #tpu.dimension_semantics<parallel>, #tpu.dimension_semantics<arbitrary>], iteration_bounds = array<i64: 1, 2, 1>, scalar_prefetch = 0 : i64, scratch_operands = 1 : i64, tpu.core_type = #tpu.core_type<tc>, window_params = [{transform_indices = @transform_0, window_bounds = array<i64: 8, 768>}, {transform_indices = @transform_1, window_bounds = array<i64: 768, 128>}, {transform_indices = @transform_2, window_bounds = array<i64: 1, 128>}, {transform_indices = @transform_3, window_bounds = array<i64: 8, 128>}]} {
    %c0_i32 = arith.constant 0 : i32
    %0 = arith.cmpi eq, %arg2, %c0_i32 : i32
    %1 = arith.extui %0 : i1 to i32
    %c0_i32_0 = arith.constant 0 : i32
    %2 = arith.cmpi ne, %1, %c0_i32_0 : i32
    scf.if %2 {
      %cst_10 = arith.constant 0.000000e+00 : f32
      %12 = vector.broadcast %cst_10 : f32 to vector<8x128xf32>
      %c0_11 = arith.constant 0 : index
      %c0_12 = arith.constant 0 : index
      %13 = vector.load %arg7[%c0_11, %c0_12] : memref<8x128xf32, #tpu.memory_space<vmem>>, vector<8x128xf32>
      tpu.vector_store %arg7[%c0_11, %c0_12], %12 {strides = array<i32>} : memref<8x128xf32, #tpu.memory_space<vmem>>, vector<8x128xf32>,
    } else {
    }
    %c0 = arith.constant 0 : index
    %c0_1 = arith.constant 0 : index
    %3 = vector.load %arg7[%c0, %c0_1] : memref<8x128xf32, #tpu.memory_space<vmem>>, vector<8x128xf32>
    %c0_2 = arith.constant 0 : index
    %c0_3 = arith.constant 0 : index
    %4 = vector.load %arg3[%c0_2, %c0_3] : memref<8x768xbf16, #tpu.memory_space<vmem>>, vector<8x768xbf16>
    %c0_4 = arith.constant 0 : index
    %c0_5 = arith.constant 0 : index
    %5 = vector.load %arg4[%c0_4, %c0_5] : memref<768x128xbf16, #tpu.memory_space<vmem>>, vector<768x128xbf16>
    %cst = arith.constant dense<0.000000e+00> : vector<8x128xf32>
    %6 = tpu.matmul %4, %5, %cst {dimension_numbers = #tpu.dot_dimension_numbers<[1], [0], [0], [1], [0, 0, 1, 1], [], []>} : vector<8x768xbf16>, vector<768x128xbf16>, vector<8x128xf32> -> vector<8x128xf32>
    %7 = arith.addf %3, %6 : vector<8x128xf32>
    %c0_6 = arith.constant 0 : index
    %c0_7 = arith.constant 0 : index
    %8 = vector.load %arg7[%c0_6, %c0_7] : memref<8x128xf32, #tpu.memory_space<vmem>>, vector<8x128xf32>
    tpu.vector_store %arg7[%c0_6, %c0_7], %7 {strides = array<i32>} : memref<8x128xf32, #tpu.memory_space<vmem>>, vector<8x128xf32>,
    %c0_i32_8 = arith.constant 0 : i32
    %9 = arith.cmpi eq, %arg2, %c0_i32_8 : i32
    %10 = arith.extui %9 : i1 to i32
    %c0_i32_9 = arith.constant 0 : i32
    %11 = arith.cmpi ne, %10, %c0_i32_9 : i32
    scf.if %11 {
      %c0_10 = arith.constant 0 : index
      %c0_11 = arith.constant 0 : index
      %12 = vector.load %arg7[%c0_10, %c0_11] : memref<8x128xf32, #tpu.memory_space<vmem>>, vector<8x128xf32>
      %c0_12 = arith.constant 0 : index
      %c0_13 = arith.constant 0 : index
      %13 = vector.load %arg5[%c0_12, %c0_13] : memref<1x128xf32, #tpu.memory_space<vmem>>, vector<1x128xf32>
      %14 = vector.broadcast %13 : vector<1x128xf32> to vector<8x128xf32>
      %15 = arith.addf %12, %14 : vector<8x128xf32>
      %16 = arith.truncf %15 : vector<8x128xf32> to vector<8x128xbf16>
      %c0_14 = arith.constant 0 : index
      %c0_15 = arith.constant 0 : index
      %17 = vector.load %arg6[%c0_14, %c0_15] : memref<8x128xbf16, #tpu.memory_space<vmem>>, vector<8x128xbf16>
      tpu.vector_store %arg6[%c0_14, %c0_15], %16 {strides = array<i32>} : memref<8x128xbf16, #tpu.memory_space<vmem>>, vector<8x128xbf16>,
    } else {
    }
    return
  }
  func.func @transform_0(%arg0: i32, %arg1: i32, %arg2: i32) -> (i32, i32) {
    %c0_i32 = arith.constant 0 : i32
    return %arg0, %arg2 : i32, i32
  }
  func.func @transform_1(%arg0: i32, %arg1: i32, %arg2: i32) -> (i32, i32) {
    %c0_i32 = arith.constant 0 : i32
    return %arg2, %arg1 : i32, i32
  }
  func.func @transform_2(%arg0: i32, %arg1: i32, %arg2: i32) -> (i32, i32) {
    %c0_i32 = arith.constant 0 : i32
    %c0_i32_0 = arith.constant 0 : i32
    return %c0_i32, %arg1 : i32, i32
  }
  func.func @transform_3(%arg0: i32, %arg1: i32, %arg2: i32) -> (i32, i32) {
    %c0_i32 = arith.constant 0 : i32
    return %arg0, %arg1 : i32, i32
  }
}

</mosaic_0001>

<llo_original>
// kernel: tpu_custom_call.1
$region0: #{tpu_custom_call.1}
  #allocation0 [shape = 'u32[]', space=smem, size = 0x4, offset = 0x4, fixed_abs, tag = 'smem constant byte address 0x4 - core index']
  #allocation1 [shape = 'u32[144,128]{1,0:T(1,128)}', space=vmem, size = 0x12000, scoped, tag = 'internal scratch']
  #allocation2 [shape = 'f32[8,128]{1,0:T(8,128)}', space=vmem, size = 0x1000, scoped, tag = 'scratch operand']
  %s0 = inlined_call_operand.hbm [shape: bf16[8,768], index: 0, kind: input, shape index: {}]
  %s1 = inlined_call_operand.hbm [shape: bf16[768,256], index: 1, kind: input, shape index: {}]
  %s2 = inlined_call_operand.vmem [shape: f32[1,256], index: 2, kind: input, shape index: {}]
  %s3 = inlined_call_operand.hbm [shape: bf16[8,256], index: 3, kind: output, shape index: {}]
  %s4 = sld [smem:[#allocation0]]
  $region61: #{tpu_custom_call.1} parent=0
    _
  %s6 = ssub.s32 1, %s4
  %s7 = scalar_select 0, %s6, %s4
  $region1: #{tpu_custom_call.1} parent=0
    #allocation3 [shape = 'u8[12288]{0}', space=vmem, size = 0x3000, scoped, tag = 'input window, operand 0, single buffered']
    #allocation4 [shape = 's32[2]{0}', space=sflag, size = 0x8, scoped, tag = 'scoped memory for tpu_custom_call.1']
    #allocation5 [shape = 's32[2]{0}', space=sflag, size = 0x8, scoped, tag = 'scoped memory for tpu_custom_call.1']
    #allocation6 [shape = 'u8[393216]{0}', space=vmem, size = 0x60000, scoped, tag = 'input window, operand 1']
    #allocation7 [shape = 's32[2]{0}', space=sflag, size = 0x8, scoped, tag = 'scoped memory for tpu_custom_call.1']
    #allocation8 [shape = 'u8[4096]{0}', space=vmem, size = 0x1000, scoped, tag = 'output window, operand 0']
    %8 = vsyncpa [#allocation4], 0
    %9 = vsyncpa [#allocation7], 0
    %s10 = scalar_lea.sflag [#allocation7], 1
    %11 = vsyncpa %s10, 0
    %12 = vsyncpa [#allocation5], 0
    %s13 = scalar_lea.sflag [#allocation5], 1
    %14 = vsyncpa %s13, 0
    loop: start=0, step=1, limit=4
    $region2: #{tpu_custom_call.1} parent=1 // loop_pre_header
      _
    $region3: #{tpu_custom_call.1} parent=1 // loop_header
      %s16 = sphi 0, %s20
      %p17 = scmp.ge.s32.totalorder %s16, 4
      %s23 = sphi 0, %s42
      %s24 = sphi 0, %s38
      %s25 = sphi 0, %s34
      %s26 = sphi 0, %s23
      %s27 = sphi 0, %s24
      %s28 = sphi 0, %s25
      %s29 = sphi 0, %s26
      %s30 = sphi 0, %s27
      %s31 = sphi 0, %s28
      %s47 = sphi 0, %s49
      %s50 = sphi 0, %s47
      %s51 = sphi 0, %s50
      %s67 = sphi 0, %s51
      %s75 = sphi 0, %s77
      %s78 = sphi 0, %s75
      %s79 = sphi 0, %s78
      %s95 = sphi 0, %s79
      %s101 = sphi 0, %s103
      %s104 = sphi 0, %s101
      %s105 = sphi 0, %s104
      %s121 = sphi 0, %s105
      %s129 = sphi 0, %s131
      %s132 = sphi 0, %s129
      %s133 = sphi 0, %s132
      %s149 = sphi 0, %s133
    $region4: #{tpu_custom_call.1} parent=1 // loop_header_branch
      %19 = sbr.rel (%p17) target = $region8
    $region5: #{tpu_custom_call.1} parent=1 // loop_body
      %s21 = ssub.s32 %s16, 1
      %s22 = ssub.s32 %s16, 2
      %s32 = sadd.s32 1, %s25
      %p33 = scmp.ge.s32.totalorder %s32, 1
      %s34 = scalar_select %p33, 0, %s32
      %s35 = sadd.s32 1, %s24
      %s36 = scalar_select %p33, %s35, %s24
      %p37 = scmp.ge.s32.totalorder %s36, 2
      %s38 = scalar_select %p37, 0, %s36
      %s39 = sadd.s32 1, %s23
      %s40 = scalar_select %p37, %s39, %s23
      %p41 = scmp.ge.s32.totalorder %s40, 1
      %s42 = scalar_select %p41, 0, %s40
      %s43 = ssub.s32 %s23, %s42
      %s44 = ssub.s32 %s25, %s34
      %s45 = sor.u32 %s43, %s44
      %p46 = scmp.eq.s32.totalorder %s45, 0
      %s48 = sadd.s32 %s47, 1
      %s49 = scalar_select %p46, %s47, %s48
      %p52 = pneg %p46
      %p53 = scmp.eq.s32.totalorder %s16, 1
      %p54 = por %p52, %p53
      %p55 = scmp.ne.s32.totalorder %s47, %s50
      %p56 = scmp.eq.s32.totalorder %s16, 0
      %p57 = por %p55, %p56
      %p58 = scmp.ne.s32.totalorder %s47, %s50
      %p59 = scmp.eq.s32.totalorder %s21, 1
      %p60 = por %p58, %p59
      %p61 = scmp.ne.s32.totalorder %s50, %s51
      %p62 = scmp.eq.s32.totalorder %s21, 0
      %p63 = por %p61, %p62
      %p64 = scmp.ne.s32.totalorder %s50, %s51
      %p65 = scmp.eq.s32.totalorder %s22, 1
      %p66 = por %p64, %p65
      %p68 = scmp.ne.s32.totalorder %s51, %s67
      %p69 = scmp.eq.s32.totalorder %s22, 0
      %p70 = por %p68, %p69
      %s71 = ssub.s32 %s25, %s34
      %s72 = ssub.s32 %s24, %s38
      %s73 = sor.u32 %s71, %s72
      %p74 = scmp.eq.s32.totalorder %s73, 0
      %s76 = sadd.s32 %s75, 1
      %s77 = scalar_select %p74, %s75, %s76
      %p80 = pneg %p74
      %p81 = scmp.eq.s32.totalorder %s16, 1
      %p82 = por %p80, %p81
      %p83 = scmp.ne.s32.totalorder %s75, %s78
      %p84 = scmp.eq.s32.totalorder %s16, 0
      %p85 = por %p83, %p84
      %p86 = scmp.ne.s32.totalorder %s75, %s78
      %p87 = scmp.eq.s32.totalorder %s21, 1
      %p88 = por %p86, %p87
      %p89 = scmp.ne.s32.totalorder %s78, %s79
      %p90 = scmp.eq.s32.totalorder %s21, 0
      %p91 = por %p89, %p90
      %p92 = scmp.ne.s32.totalorder %s78, %s79
      %p93 = scmp.eq.s32.totalorder %s22, 1
      %p94 = por %p92, %p93
      %p96 = scmp.ne.s32.totalorder %s79, %s95
      %p97 = scmp.eq.s32.totalorder %s22, 0
      %p98 = por %p96, %p97
      %s99 = ssub.s32 %s24, %s38
      %p100 = scmp.eq.s32.totalorder %s99, 0
      %s102 = sadd.s32 %s101, 1
      %s103 = scalar_select %p100, %s101, %s102
      %p106 = pneg %p100
      %p107 = scmp.eq.s32.totalorder %s16, 1
      %p108 = por %p106, %p107
      %p109 = scmp.ne.s32.totalorder %s101, %s104
      %p110 = scmp.eq.s32.totalorder %s16, 0
      %p111 = por %p109, %p110
      %p112 = scmp.ne.s32.totalorder %s101, %s104
      %p113 = scmp.eq.s32.totalorder %s21, 1
      %p114 = por %p112, %p113
      %p115 = scmp.ne.s32.totalorder %s104, %s105
      %p116 = scmp.eq.s32.totalorder %s21, 0
      %p117 = por %p115, %p116
      %p118 = scmp.ne.s32.totalorder %s104, %s105
      %p119 = scmp.eq.s32.totalorder %s22, 1
      %p120 = por %p118, %p119
      %p122 = scmp.ne.s32.totalorder %s105, %s121
      %p123 = scmp.eq.s32.totalorder %s22, 0
      %p124 = por %p122, %p123
      %s125 = ssub.s32 %s23, %s42
      %s126 = ssub.s32 %s24, %s38
      %s127 = sor.u32 %s125, %s126
      %p128 = scmp.eq.s32.totalorder %s127, 0
      %s130 = sadd.s32 %s129, 1
      %s131 = scalar_select %p128, %s129, %s130
      %p134 = pneg %p128
      %p135 = scmp.eq.s32.totalorder %s16, 1
      %p136 = por %p134, %p135
      %p137 = scmp.ne.s32.totalorder %s129, %s132
      %p138 = scmp.eq.s32.totalorder %s16, 0
      %p139 = por %p137, %p138
      %p140 = scmp.ne.s32.totalorder %s129, %s132
      %p141 = scmp.eq.s32.totalorder %s21, 1
      %p142 = por %p140, %p141
      %p143 = scmp.ne.s32.totalorder %s132, %s133
      %p144 = scmp.eq.s32.totalorder %s21, 0
      %p145 = por %p143, %p144
      %p146 = scmp.ne.s32.totalorder %s132, %s133
      %p147 = scmp.eq.s32.totalorder %s22, 1
      %p148 = por %p146, %p147
      %p150 = scmp.ne.s32.totalorder %s133, %s149
      %p151 = scmp.eq.s32.totalorder %s22, 0
      %p152 = por %p150, %p151
      %p153 = scmp.le.s32.totalorder 1, %s16
      %p154 = scmp.lt.s32.totalorder %s16, 3
      %p155 = pnand %p153, %p154
      %p156 = pneg %p155
      // Predicated region
      $region9: #{tpu_custom_call.1} parent=5 // pred_check
        _
      $region10: #{tpu_custom_call.1} parent=5 // pred_check_branch
        %158 = sbr.rel (%p155) target = $region12
      $region11: #{tpu_custom_call.1} parent=5 // pred_region
        %s159 = ssub.s32 %s16, 1
        // Predicated region
        $region13: #{tpu_custom_call.1} parent=11 // pred_check
          %p160 = pneg %p63
        $region14: #{tpu_custom_call.1} parent=11 // pred_check_branch
          %162 = sbr.rel (%p160) target = $region16
        $region15: #{tpu_custom_call.1} parent=11 // pred_region
          %s163 = smul.u32 6, %s28
          %s165 = ssub.s32 384, 384
          %166 = vsyncadd [#allocation4], %s165
          %s167 = smul.addr %s26, 6
          %s168 = sadd.s32 %s163, %s167
          %s169 = smul.addr %s168, 64
          %s170 = scalar_lea.hbm %s0, %s169
          %s172 = sshll.u32 [#allocation3], 4
          %s173 = int_to_ptr.vmem [resolvable:$true] %s172
          %175 = dma.hbm_to_vmem [thread:$0]  %s170, 384, %s173, [#allocation4]
        $region16: #{tpu_custom_call.1} parent=11 // pred_fallthru
          _
      $region12: #{tpu_custom_call.1} parent=5 // pred_fallthru
        _
      %p176 = scmp.lt.s32.totalorder %s16, 2
      // Predicated region
      $region17: #{tpu_custom_call.1} parent=5 // pred_check
        %p177 = pneg %p176
      $region18: #{tpu_custom_call.1} parent=5 // pred_check_branch
        %179 = sbr.rel (%p177) target = $region20
      $region19: #{tpu_custom_call.1} parent=5 // pred_region
        // Predicated region
        $region21: #{tpu_custom_call.1} parent=19 // pred_check
          %p180 = pneg %p85
        $region22: #{tpu_custom_call.1} parent=19 // pred_check_branch
          %182 = sbr.rel (%p180) target = $region24
        $region23: #{tpu_custom_call.1} parent=19 // pred_region
          %s183 = sand.u32 %s75, 1
          %s184 = scalar_lea.sflag [#allocation7], %s183
          %s185 = sand.u32 %s75, 1
          %s186 = smul.addr %s185, 384
          %s187 = scalar_lea.vmem [#allocation6], %s186
          %s188 = smul.u32 96, %s25
          %s190 = ssub.s32 6144, 6144
          %191 = vsyncadd %s184, %s190
          %s192 = smul.addr %s188, 2
          %s193 = sadd.s32 %s24, %s192
          %s194 = smul.addr %s193, 64
          %s195 = scalar_lea.hbm %s1, %s194
          %s196 = sshll.u32 %s187, 4
          %s197 = int_to_ptr.vmem [resolvable:$true] %s196
          %202 = dma.hbm_to_vmem [thread:$0]  %s195, 6144, %s197, %s184, 128, 64, 4
        $region24: #{tpu_custom_call.1} parent=19 // pred_fallthru
          _
        // Predicated region
        $region25: #{tpu_custom_call.1} parent=19 // pred_check
          %p203 = pneg %p111
        $region26: #{tpu_custom_call.1} parent=19 // pred_check_branch
          %205 = sbr.rel (%p203) target = $region28
        $region27: #{tpu_custom_call.1} parent=19 // pred_region
          %p206 = scmp.lt.s32.totalorder %s24, 1
          %s207 = scalar_select %p206, %s24, 1
          %s208 = scalar_lea.vmem %s2, %s207
        $region28: #{tpu_custom_call.1} parent=19 // pred_fallthru
          _
      $region20: #{tpu_custom_call.1} parent=5 // pred_fallthru
        _
      %p209 = scmp.le.s32.totalorder 1, %s16
      %p210 = scmp.lt.s32.totalorder %s16, 3
      %p211 = pnand %p209, %p210
      %p212 = pneg %p211
      // Predicated region
      $region29: #{tpu_custom_call.1} parent=5 // pred_check
        _
      $region30: #{tpu_custom_call.1} parent=5 // pred_check_branch
        %214 = sbr.rel (%p211) target = $region32
      $region31: #{tpu_custom_call.1} parent=5 // pred_region
        %s215 = ssub.s32 %s16, 1
        // Predicated region
        $region33: #{tpu_custom_call.1} parent=31 // pred_check
          %p216 = pneg %p63
        $region34: #{tpu_custom_call.1} parent=31 // pred_check_branch
          %218 = sbr.rel (%p216) target = $region36
        $region35: #{tpu_custom_call.1} parent=31 // pred_region
          %219 = dma.done [#allocation4], 384
        $region36: #{tpu_custom_call.1} parent=31 // pred_fallthru
          _
        %s220 = sand.u32 %s78, 1
        %s221 = scalar_lea.sflag [#allocation7], %s220
        %s222 = sand.u32 %s78, 1
        %s223 = smul.addr %s222, 384
        %s224 = scalar_lea.vmem [#allocation6], %s223
        // Predicated region
        $region37: #{tpu_custom_call.1} parent=31 // pred_check
          %p225 = pneg %p91
        $region38: #{tpu_custom_call.1} parent=31 // pred_check_branch
          %227 = sbr.rel (%p225) target = $region40
        $region39: #{tpu_custom_call.1} parent=31 // pred_region
          %228 = dma.done %s221, 6144
        $region40: #{tpu_custom_call.1} parent=31 // pred_fallthru
          _
        %p229 = pneg %p63
        %p230 = pneg %p60
        %s231 = sand.u32 %s78, 1
        %s232 = scalar_lea.sflag [#allocation7], %s231
        %s233 = sand.u32 %s78, 1
        %s234 = smul.addr %s233, 384
        %s235 = scalar_lea.vmem [#allocation6], %s234
        %p236 = pneg %p91
        %p237 = pneg %p88
        %p238 = scmp.lt.s32.totalorder %s27, 1
        %s239 = scalar_select %p238, %s27, 1
        %s240 = scalar_lea.vmem %s2, %s239
        %p241 = pneg %p117
        %p242 = pneg %p114
        %p243 = pneg %p145
        %p244 = pneg %p142
        %s245 = sand.u32 %s132, 1
        %s246 = scalar_lea.sflag [#allocation5], %s245
        %s247 = sand.u32 %s132, 1
        %s248 = smul.addr %s247, 4
        %s249 = scalar_lea.vmem [#allocation8], %s248
        %s250 = smul.u32 6, %s28
        %s251 = smul.u32 96, %s28
        %p252 = scmp.lt.s32.totalorder %s27, 1
        %s253 = scalar_select %p252, %s27, 1
        %s254 = scalar_lea.vmem %s2, %s253
        %p256 = scmp.eq.s32.totalorder %s28, 0
        // Predicated region
        $region41: #{tpu_custom_call.1} parent=31 // pred_check
          %p257 = pneg %p256
        $region42: #{tpu_custom_call.1} parent=31 // pred_check_branch
          %259 = sbr.rel (%p257) target = $region44
        $region43: #{tpu_custom_call.1} parent=31 // pred_region
          %260 = vst [vmem:[#allocation2] sm:$0xff] 0.0
        $region44: #{tpu_custom_call.1} parent=31 // pred_fallthru
          _
        %v261 = vld [vmem:[#allocation2] sm:$0xff]
        %v262 = vld [vmem:[#allocation3] sm:$0xff]
        %v263 = vld [vmem:[#allocation3 + $0x8] sm:$0xff]
        %v264 = vld [vmem:[#allocation3 + $0x10] sm:$0xff]
        %v265 = vld [vmem:[%s224] sm:$0xf]
        %v266 = vld [vmem:[%s224 + $0x4] sm:$0xf]
        %v267 = vld [vmem:[%s224 + $0x8] sm:$0xf]
        %v268 = vld [vmem:[%s224 + $0xc] sm:$0xf]
        %v269 = vld [vmem:[%s224 + $0x10] sm:$0xf]
        %v270 = vld [vmem:[%s224 + $0x14] sm:$0xf]
        %v271 = vld [vmem:[%s224 + $0x18] sm:$0xf]
        %v272 = vld [vmem:[%s224 + $0x1c] sm:$0xf]
        %v273 = vld [vmem:[%s224 + $0x20] sm:$0xf]
        %v274 = vld [vmem:[%s224 + $0x24] sm:$0xf]
        %v275 = vld [vmem:[%s224 + $0x28] sm:$0xf]
        %v276 = vld [vmem:[%s224 + $0x2c] sm:$0xf]
        %v277 = vld [vmem:[%s224 + $0x30] sm:$0xf]
        %v278 = vld [vmem:[%s224 + $0x34] sm:$0xf]
        %v279 = vld [vmem:[%s224 + $0x38] sm:$0xf]
        %v280 = vld [vmem:[%s224 + $0x3c] sm:$0xf]
        %v281 = vld [vmem:[%s224 + $0x40] sm:$0xf]
        %v282 = vld [vmem:[%s224 + $0x44] sm:$0xf]
        %v283 = vld [vmem:[%s224 + $0x48] sm:$0xf]
        %v284 = vld [vmem:[%s224 + $0x4c] sm:$0xf]
        %v285 = vld [vmem:[%s224 + $0x50] sm:$0xf]
        %v286 = vld [vmem:[%s224 + $0x54] sm:$0xf]
        %v287 = vld [vmem:[%s224 + $0x58] sm:$0xf]
        %v288 = vld [vmem:[%s224 + $0x5c] sm:$0xf]
        %v289 = vld [vmem:[%s224 + $0x60] sm:$0xf]
        %v290 = vld [vmem:[%s224 + $0x64] sm:$0xf]
        %v291 = vld [vmem:[%s224 + $0x68] sm:$0xf]
        %v292 = vld [vmem:[%s224 + $0x6c] sm:$0xf]
        %v293 = vld [vmem:[%s224 + $0x70] sm:$0xf]
        %v294 = vld [vmem:[%s224 + $0x74] sm:$0xf]
        %v295 = vld [vmem:[%s224 + $0x78] sm:$0xf]
        %v296 = vld [vmem:[%s224 + $0x7c] sm:$0xf]
        %v297 = vld [vmem:[%s224 + $0x80] sm:$0xf]
        %v298 = vld [vmem:[%s224 + $0x84] sm:$0xf]
        %v299 = vld [vmem:[%s224 + $0x88] sm:$0xf]
        %v300 = vld [vmem:[%s224 + $0x8c] sm:$0xf]
        %v301 = vld [vmem:[%s224 + $0x90] sm:$0xf]
        %v302 = vld [vmem:[%s224 + $0x94] sm:$0xf]
        %v303 = vld [vmem:[%s224 + $0x98] sm:$0xf]
        %v304 = vld [vmem:[%s224 + $0x9c] sm:$0xf]
        %v305 = vld [vmem:[%s224 + $0xa0] sm:$0xf]
        %v306 = vld [vmem:[%s224 + $0xa4] sm:$0xf]
        %v307 = vld [vmem:[%s224 + $0xa8] sm:$0xf]
        %v308 = vld [vmem:[%s224 + $0xac] sm:$0xf]
        %v309 = vld [vmem:[%s224 + $0xb0] sm:$0xf]
        %v310 = vld [vmem:[%s224 + $0xb4] sm:$0xf]
        %v311 = vld [vmem:[%s224 + $0xb8] sm:$0xf]
        %v312 = vld [vmem:[%s224 + $0xbc] sm:$0xf]
        %v313 = vld [vmem:[%s224 + $0xc0] sm:$0xf]
        %v314 = vld [vmem:[%s224 + $0xc4] sm:$0xf]
        %v315 = vld [vmem:[%s224 + $0xc8] sm:$0xf]
        %v316 = vld [vmem:[%s224 + $0xcc] sm:$0xf]
        %v317 = vld [vmem:[%s224 + $0xd0] sm:$0xf]
        %v318 = vld [vmem:[%s224 + $0xd4] sm:$0xf]
        %v319 = vld [vmem:[%s224 + $0xd8] sm:$0xf]
        %v320 = vld [vmem:[%s224 + $0xdc] sm:$0xf]
        %v321 = vld [vmem:[%s224 + $0xe0] sm:$0xf]
        %v322 = vld [vmem:[%s224 + $0xe4] sm:$0xf]
        %v323 = vld [vmem:[%s224 + $0xe8] sm:$0xf]
        %v324 = vld [vmem:[%s224 + $0xec] sm:$0xf]
        %v325 = vld [vmem:[%s224 + $0xf0] sm:$0xf]
        %v326 = vld [vmem:[%s224 + $0xf4] sm:$0xf]
        %v327 = vld [vmem:[%s224 + $0xf8] sm:$0xf]
        %v328 = vld [vmem:[%s224 + $0xfc] sm:$0xf]
        %v329 = vld [vmem:[%s224 + $0x100] sm:$0xf]
        %v330 = vld [vmem:[%s224 + $0x104] sm:$0xf]
        %v331 = vld [vmem:[%s224 + $0x108] sm:$0xf]
        %v332 = vld [vmem:[%s224 + $0x10c] sm:$0xf]
        %v333 = vld [vmem:[%s224 + $0x110] sm:$0xf]
        %v334 = vld [vmem:[%s224 + $0x114] sm:$0xf]
        %v335 = vld [vmem:[%s224 + $0x118] sm:$0xf]
        %v336 = vld [vmem:[%s224 + $0x11c] sm:$0xf]
        %v337 = vld [vmem:[%s224 + $0x120] sm:$0xf]
        %v338 = vld [vmem:[%s224 + $0x124] sm:$0xf]
        %v339 = vld [vmem:[%s224 + $0x128] sm:$0xf]
        %v340 = vld [vmem:[%s224 + $0x12c] sm:$0xf]
        %v341 = vld [vmem:[%s224 + $0x130] sm:$0xf]
        %v342 = vld [vmem:[%s224 + $0x134] sm:$0xf]
        %v343 = vld [vmem:[%s224 + $0x138] sm:$0xf]
        %v344 = vld [vmem:[%s224 + $0x13c] sm:$0xf]
        %v345 = vld [vmem:[%s224 + $0x140] sm:$0xf]
        %v346 = vld [vmem:[%s224 + $0x144] sm:$0xf]
        %v347 = vld [vmem:[%s224 + $0x148] sm:$0xf]
        %v348 = vld [vmem:[%s224 + $0x14c] sm:$0xf]
        %v349 = vld [vmem:[%s224 + $0x150] sm:$0xf]
        %v350 = vld [vmem:[%s224 + $0x154] sm:$0xf]
        %v351 = vld [vmem:[%s224 + $0x158] sm:$0xf]
        %v352 = vld [vmem:[%s224 + $0x15c] sm:$0xf]
        %v353 = vld [vmem:[%s224 + $0x160] sm:$0xf]
        %v354 = vld [vmem:[%s224 + $0x164] sm:$0xf]
        %v355 = vld [vmem:[%s224 + $0x168] sm:$0xf]
        %v356 = vld [vmem:[%s224 + $0x16c] sm:$0xf]
        %v357 = vld [vmem:[%s224 + $0x170] sm:$0xf]
        %v358 = vld [vmem:[%s224 + $0x174] sm:$0xf]
        %v359 = vld [vmem:[%s224 + $0x178] sm:$0xf]
        %v360 = vld [vmem:[%s224 + $0x17c] sm:$0xf]
        %v364 = vunpack.c.l.b16 %v262
        %v365 = vunpack.c.h.b16 %v262
        %v366 = vunpack.c.l.b16 %v263
        %v367 = vunpack.c.h.b16 %v263
        %v368 = vunpack.c.l.b16 %v264
        %v369 = vunpack.c.h.b16 %v264
        %v370 = vpack.c.b16 %v364, %v364
        %v371 = vpack.c.b16 %v365, %v365
        %v372 = vpack.c.b16 %v366, %v366
        %v373 = vpack.c.b16 %v367, %v367
        %v374 = vpack.c.b16 %v368, %v368
        %v375 = vpack.c.b16 %v369, %v369
        %v478 = vunpack.c.l.b16 %v265
        %v479 = vunpack.c.l.b16 %v266
        %v480 = vunpack.c.l.b16 %v267
        %v481 = vunpack.c.l.b16 %v268
        %v482 = vunpack.c.l.b16 %v269
        %v483 = vunpack.c.l.b16 %v270
        %v484 = vunpack.c.l.b16 %v271
        %v485 = vunpack.c.l.b16 %v272
        %v486 = vunpack.c.l.b16 %v273
        %v487 = vunpack.c.l.b16 %v274
        %v488 = vunpack.c.l.b16 %v275
        %v489 = vunpack.c.l.b16 %v276
        %v490 = vunpack.c.l.b16 %v277
        %v491 = vunpack.c.l.b16 %v278
        %v492 = vunpack.c.l.b16 %v279
        %v493 = vunpack.c.l.b16 %v280
        %v494 = vunpack.c.l.b16 %v281
        %v495 = vunpack.c.l.b16 %v282
        %v496 = vunpack.c.l.b16 %v283
        %v497 = vunpack.c.l.b16 %v284
        %v498 = vunpack.c.l.b16 %v285
        %v499 = vunpack.c.l.b16 %v286
        %v500 = vunpack.c.l.b16 %v287
        %v501 = vunpack.c.l.b16 %v288
        %v502 = vunpack.c.l.b16 %v289
        %v503 = vunpack.c.l.b16 %v290
        %v504 = vunpack.c.l.b16 %v291
        %v505 = vunpack.c.l.b16 %v292
        %v506 = vunpack.c.l.b16 %v293
        %v507 = vunpack.c.l.b16 %v294
        %v508 = vunpack.c.l.b16 %v295
        %v509 = vunpack.c.l.b16 %v296
        %v510 = vunpack.c.l.b16 %v297
        %v511 = vunpack.c.l.b16 %v298
        %v512 = vunpack.c.l.b16 %v299
        %v513 = vunpack.c.l.b16 %v300
        %v514 = vunpack.c.l.b16 %v301
        %v515 = vunpack.c.l.b16 %v302
        %v516 = vunpack.c.l.b16 %v303
        %v517 = vunpack.c.l.b16 %v304
        %v518 = vunpack.c.l.b16 %v305
        %v519 = vunpack.c.l.b16 %v306
        %v520 = vunpack.c.l.b16 %v307
        %v521 = vunpack.c.l.b16 %v308
        %v522 = vunpack.c.l.b16 %v309
        %v523 = vunpack.c.l.b16 %v310
        %v524 = vunpack.c.l.b16 %v311
        %v525 = vunpack.c.l.b16 %v312
        %v526 = vunpack.c.l.b16 %v313
        %v527 = vunpack.c.l.b16 %v314
        %v528 = vunpack.c.l.b16 %v315
        %v529 = vunpack.c.l.b16 %v316
        %v530 = vunpack.c.l.b16 %v317
        %v531 = vunpack.c.l.b16 %v318
        %v532 = vunpack.c.l.b16 %v319
        %v533 = vunpack.c.l.b16 %v320
        %v534 = vunpack.c.l.b16 %v321
        %v535 = vunpack.c.l.b16 %v322
        %v536 = vunpack.c.l.b16 %v323
        %v537 = vunpack.c.l.b16 %v324
        %v538 = vunpack.c.l.b16 %v325
        %v539 = vunpack.c.l.b16 %v326
        %v540 = vunpack.c.l.b16 %v327
        %v541 = vunpack.c.l.b16 %v328
        %v542 = vunpack.c.l.b16 %v329
        %v543 = vunpack.c.l.b16 %v330
        %v544 = vunpack.c.l.b16 %v331
        %v545 = vunpack.c.l.b16 %v332
        %v546 = vunpack.c.l.b16 %v333
        %v547 = vunpack.c.l.b16 %v334
        %v548 = vunpack.c.l.b16 %v335
        %v549 = vunpack.c.l.b16 %v336
        %v550 = vunpack.c.l.b16 %v337
        %v551 = vunpack.c.l.b16 %v338
        %v552 = vunpack.c.l.b16 %v339
        %v553 = vunpack.c.l.b16 %v340
        %v554 = vunpack.c.l.b16 %v341
        %v555 = vunpack.c.l.b16 %v342
        %v556 = vunpack.c.l.b16 %v343
        %v557 = vunpack.c.l.b16 %v344
        %v558 = vunpack.c.l.b16 %v345
        %v559 = vunpack.c.l.b16 %v346
        %v560 = vunpack.c.l.b16 %v347
        %v561 = vunpack.c.l.b16 %v348
        %v562 = vunpack.c.l.b16 %v349
        %v563 = vunpack.c.l.b16 %v350
        %v564 = vunpack.c.l.b16 %v351
        %v565 = vunpack.c.l.b16 %v352
        %v566 = vunpack.c.l.b16 %v353
        %v567 = vunpack.c.l.b16 %v354
        %v568 = vunpack.c.l.b16 %v355
        %v569 = vunpack.c.l.b16 %v356
        %v570 = vunpack.c.l.b16 %v357
        %v571 = vunpack.c.l.b16 %v358
        %v572 = vunpack.c.l.b16 %v359
        %v573 = vunpack.c.l.b16 %v360
        %v574 = vpack.c.b16 %v479, %v478
        %v575 = vpack.c.b16 %v481, %v480
        %v576 = vpack.c.b16 %v483, %v482
        %v577 = vpack.c.b16 %v485, %v484
        %v578 = vpack.c.b16 %v487, %v486
        %v579 = vpack.c.b16 %v489, %v488
        %v580 = vpack.c.b16 %v491, %v490
        %v581 = vpack.c.b16 %v493, %v492
        %v582 = vpack.c.b16 %v495, %v494
        %v583 = vpack.c.b16 %v497, %v496
        %v584 = vpack.c.b16 %v499, %v498
        %v585 = vpack.c.b16 %v501, %v500
        %v586 = vpack.c.b16 %v503, %v502
        %v587 = vpack.c.b16 %v505, %v504
        %v588 = vpack.c.b16 %v507, %v506
        %v589 = vpack.c.b16 %v509, %v508
        %v590 = vpack.c.b16 %v511, %v510
        %v591 = vpack.c.b16 %v513, %v512
        %v592 = vpack.c.b16 %v515, %v514
        %v593 = vpack.c.b16 %v517, %v516
        %v594 = vpack.c.b16 %v519, %v518
        %v595 = vpack.c.b16 %v521, %v520
        %v596 = vpack.c.b16 %v523, %v522
        %v597 = vpack.c.b16 %v525, %v524
        %v598 = vpack.c.b16 %v527, %v526
        %v599 = vpack.c.b16 %v529, %v528
        %v600 = vpack.c.b16 %v531, %v530
        %v601 = vpack.c.b16 %v533, %v532
        %v602 = vpack.c.b16 %v535, %v534
        %v603 = vpack.c.b16 %v537, %v536
        %v604 = vpack.c.b16 %v539, %v538
        %v605 = vpack.c.b16 %v541, %v540
        %v606 = vpack.c.b16 %v543, %v542
        %v607 = vpack.c.b16 %v545, %v544
        %v608 = vpack.c.b16 %v547, %v546
        %v609 = vpack.c.b16 %v549, %v548
        %v610 = vpack.c.b16 %v551, %v550
        %v611 = vpack.c.b16 %v553, %v552
        %v612 = vpack.c.b16 %v555, %v554
        %v613 = vpack.c.b16 %v557, %v556
        %v614 = vpack.c.b16 %v559, %v558
        %v615 = vpack.c.b16 %v561, %v560
        %v616 = vpack.c.b16 %v563, %v562
        %v617 = vpack.c.b16 %v565, %v564
        %v618 = vpack.c.b16 %v567, %v566
        %v619 = vpack.c.b16 %v569, %v568
        %v620 = vpack.c.b16 %v571, %v570
        %v621 = vpack.c.b16 %v573, %v572
        %670 = vmatprep.subr.bf16.mxu0 0
        %671 = vmatpush1.bf16.msra.mxu0 %v581
        %672 = vmatprep.subr.bf16.mxu0 0
        %673 = vmatpush1.bf16.msra.mxu0 %v580
        %674 = vmatprep.subr.bf16.mxu0 0
        %675 = vmatpush1.bf16.msra.mxu0 %v579
        %676 = vmatprep.subr.bf16.mxu0 0
        %677 = vmatpush1.bf16.msra.mxu0 %v578
        %678 = vmatprep.subr.bf16.mxu0 0
        %679 = vmatpush1.bf16.msra.mxu0 %v577
        %680 = vmatprep.subr.bf16.mxu0 0
        %681 = vmatpush1.bf16.msra.mxu0 %v576
        %682 = vmatprep.subr.bf16.mxu0 0
        %683 = vmatpush1.bf16.msra.mxu0 %v575
        %684 = vmatprep.subr.bf16.mxu0 0
        %685 = vmatpush1.bf16.msra.mxu0 %v574
        %686 = vmatprep.subr.bf16.mxu0 0
        %687 = vmatpush2.bf16.msra.mxu0 %v589
        %688 = vmatprep.subr.bf16.mxu0 0
        %689 = vmatpush2.bf16.msra.mxu0 %v588
        %690 = vmatprep.subr.bf16.mxu0 0
        %691 = vmatpush2.bf16.msra.mxu0 %v587
        %692 = vmatprep.subr.bf16.mxu0 0
        %693 = vmatpush2.bf16.msra.mxu0 %v586
        %694 = vmatprep.subr.bf16.mxu0 0
        %695 = vmatpush2.bf16.msra.mxu0 %v585
        %696 = vmatprep.subr.bf16.mxu0 0
        %697 = vmatpush2.bf16.msra.mxu0 %v584
        %698 = vmatprep.subr.bf16.mxu0 0
        %699 = vmatpush2.bf16.msra.mxu0 %v583
        %700 = vmatprep.subr.bf16.mxu0 0
        %701 = vmatpush2.bf16.msra.mxu0 %v582
        %702 = vmatprep.mubr.bf16.mxu0 %v371
        %703 = vmatmul.mubr.bf16.gmra.mxu0 %v370
        %v704 = vpop.f32.mrf.mxu0
        %v705 = vadd.f32 0.0, %v704
        %v706 = vpop.f32.mrf.mxu0
        %v707 = vpop.f32.mrf.mxu0
        %v708 = vpop.f32.mrf.mxu0
        %709 = vdwg.mxu0
        %710 = vmatprep.subr.bf16.mxu0 0
        %711 = vmatpush1.bf16.msra.mxu0 %v597
        %712 = vmatprep.subr.bf16.mxu0 0
        %713 = vmatpush1.bf16.msra.mxu0 %v596
        %714 = vmatprep.subr.bf16.mxu0 0
        %715 = vmatpush1.bf16.msra.mxu0 %v595
        %716 = vmatprep.subr.bf16.mxu0 0
        %717 = vmatpush1.bf16.msra.mxu0 %v594
        %718 = vmatprep.subr.bf16.mxu0 0
        %719 = vmatpush1.bf16.msra.mxu0 %v593
        %720 = vmatprep.subr.bf16.mxu0 0
        %721 = vmatpush1.bf16.msra.mxu0 %v592
        %722 = vmatprep.subr.bf16.mxu0 0
        %723 = vmatpush1.bf16.msra.mxu0 %v591
        %724 = vmatprep.subr.bf16.mxu0 0
        %725 = vmatpush1.bf16.msra.mxu0 %v590
        %726 = vmatprep.subr.bf16.mxu0 0
        %727 = vmatpush2.bf16.msra.mxu0 %v605
        %728 = vmatprep.subr.bf16.mxu0 0
        %729 = vmatpush2.bf16.msra.mxu0 %v604
        %730 = vmatprep.subr.bf16.mxu0 0
        %731 = vmatpush2.bf16.msra.mxu0 %v603
        %732 = vmatprep.subr.bf16.mxu0 0
        %733 = vmatpush2.bf16.msra.mxu0 %v602
        %734 = vmatprep.subr.bf16.mxu0 0
        %735 = vmatpush2.bf16.msra.mxu0 %v601
        %736 = vmatprep.subr.bf16.mxu0 0
        %737 = vmatpush2.bf16.msra.mxu0 %v600
        %738 = vmatprep.subr.bf16.mxu0 0
        %739 = vmatpush2.bf16.msra.mxu0 %v599
        %740 = vmatprep.subr.bf16.mxu0 0
        %741 = vmatpush2.bf16.msra.mxu0 %v598
        %742 = vmatprep.mubr.bf16.mxu0 %v373
        %743 = vmatmul.mubr.bf16.gmra.mxu0 %v372
        %v744 = vpop.f32.mrf.mxu0
        %v745 = vadd.f32 %v705, %v744
        %v746 = vpop.f32.mrf.mxu0
        %v747 = vpop.f32.mrf.mxu0
        %v748 = vpop.f32.mrf.mxu0
        %749 = vdwg.mxu0
        %750 = vmatprep.subr.bf16.mxu0 0
        %751 = vmatpush1.bf16.msra.mxu0 %v613
        %752 = vmatprep.subr.bf16.mxu0 0
        %753 = vmatpush1.bf16.msra.mxu0 %v612
        %754 = vmatprep.subr.bf16.mxu0 0
        %755 = vmatpush1.bf16.msra.mxu0 %v611
        %756 = vmatprep.subr.bf16.mxu0 0
        %757 = vmatpush1.bf16.msra.mxu0 %v610
        %758 = vmatprep.subr.bf16.mxu0 0
        %759 = vmatpush1.bf16.msra.mxu0 %v609
        %760 = vmatprep.subr.bf16.mxu0 0
        %761 = vmatpush1.bf16.msra.mxu0 %v608
        %762 = vmatprep.subr.bf16.mxu0 0
        %763 = vmatpush1.bf16.msra.mxu0 %v607
        %764 = vmatprep.subr.bf16.mxu0 0
        %765 = vmatpush1.bf16.msra.mxu0 %v606
        %766 = vmatprep.subr.bf16.mxu0 0
        %767 = vmatpush2.bf16.msra.mxu0 %v621
        %768 = vmatprep.subr.bf16.mxu0 0
        %769 = vmatpush2.bf16.msra.mxu0 %v620
        %770 = vmatprep.subr.bf16.mxu0 0
        %771 = vmatpush2.bf16.msra.mxu0 %v619
        %772 = vmatprep.subr.bf16.mxu0 0
        %773 = vmatpush2.bf16.msra.mxu0 %v618
        %774 = vmatprep.subr.bf16.mxu0 0
        %775 = vmatpush2.bf16.msra.mxu0 %v617
        %776 = vmatprep.subr.bf16.mxu0 0
        %777 = vmatpush2.bf16.msra.mxu0 %v616
        %778 = vmatprep.subr.bf16.mxu0 0
        %779 = vmatpush2.bf16.msra.mxu0 %v615
        %780 = vmatprep.subr.bf16.mxu0 0
        %781 = vmatpush2.bf16.msra.mxu0 %v614
        %782 = vmatprep.mubr.bf16.mxu0 %v375
        %783 = vmatmul.mubr.bf16.gmra.mxu0 %v374
        %v784 = vpop.f32.mrf.mxu0
        %v785 = vadd.f32 %v745, %v784
        %v786 = vpop.f32.mrf.mxu0
        %v787 = vpop.f32.mrf.mxu0
        %v788 = vpop.f32.mrf.mxu0
        %789 = vdwg.mxu0
        %v790 = vadd.f32 %v261, %v785
        %791 = vst [vmem:[#allocation2] sm:$0xff] %v790
        // Predicated region
        $region45: #{tpu_custom_call.1} parent=31 // pred_check
          %p792 = pneg %p256
        $region46: #{tpu_custom_call.1} parent=31 // pred_check_branch
          %794 = sbr.rel (%p792) target = $region48
        $region47: #{tpu_custom_call.1} parent=31 // pred_region
          %v795 = vld [vmem:[#allocation2] sm:$0xff]
          %v796 = vld [vmem:[%s254] sm:$0x1]
          %v798 = vlaneseq
          %v799 = vshrl.u32 %v798, 7
          %v800 = vsub.s32 0, %v799
          %v801 = vrot.slane %v796, %v800
          %v803 = vadd.f32 %v795, %v801
          %v804 = vpack.c.bf16 %v803, %v803
          %805 = vst [vmem:[%s249] sm:$0xf] %v804
        $region48: #{tpu_custom_call.1} parent=31 // pred_fallthru
          _
        %s806 = sand.u32 %s132, 1
        %s807 = scalar_lea.sflag [#allocation5], %s806
        %s808 = sand.u32 %s132, 1
        %s809 = smul.addr %s808, 4
        %s810 = scalar_lea.vmem [#allocation8], %s809
        // Predicated region
        $region49: #{tpu_custom_call.1} parent=31 // pred_check
          %p811 = pneg %p142
        $region50: #{tpu_custom_call.1} parent=31 // pred_check_branch
          %813 = sbr.rel (%p811) target = $region52
        $region51: #{tpu_custom_call.1} parent=31 // pred_region
          %s815 = ssub.s32 64, 64
          %816 = vsyncadd %s807, %s815
          %s817 = smul.addr %s26, 2
          %s818 = sadd.s32 %s27, %s817
          %s819 = smul.addr %s818, 64
          %s820 = scalar_lea.hbm %s3, %s819
          %s822 = sshll.u32 %s810, 4
          %s823 = int_to_ptr.vmem [resolvable:$true] %s822
          %825 = dma.vmem_to_hbm [thread:$0]  %s823, 64, %s820, %s807
        $region52: #{tpu_custom_call.1} parent=31 // pred_fallthru
          _
      $region32: #{tpu_custom_call.1} parent=5 // pred_fallthru
        _
      %p826 = scmp.le.s32.totalorder 2, %s16
      // Predicated region
      $region53: #{tpu_custom_call.1} parent=5 // pred_check
        %p827 = pneg %p826
      $region54: #{tpu_custom_call.1} parent=5 // pred_check_branch
        %829 = sbr.rel (%p827) target = $region56
      $region55: #{tpu_custom_call.1} parent=5 // pred_region
        %s830 = ssub.s32 %s16, 2
        // Predicated region
        $region57: #{tpu_custom_call.1} parent=55 // pred_check
          %p831 = pneg %p148
        $region58: #{tpu_custom_call.1} parent=55 // pred_check_branch
          %833 = sbr.rel (%p831) target = $region60
        $region59: #{tpu_custom_call.1} parent=55 // pred_region
          %s834 = sand.u32 %s133, 1
          %s835 = scalar_lea.sflag [#allocation5], %s834
          %s836 = sand.u32 %s133, 1
          %s837 = smul.addr %s836, 4
          %s838 = scalar_lea.vmem [#allocation8], %s837
          %839 = dma.done %s835, 64
        $region60: #{tpu_custom_call.1} parent=55 // pred_fallthru
          _
      $region56: #{tpu_custom_call.1} parent=5 // pred_fallthru
        _
    $region6: #{tpu_custom_call.1} parent=1 // loop_footer
      %s20 = sadd.s32 1, %s16
    $region7: #{tpu_custom_call.1} parent=1 // loop_footer_branch
      %15 = sbr.rel target = $region3
    $region8: #{tpu_custom_call.1} parent=1 // loop_exit
      _
    %840 = vsyncpa [#allocation4], 1
    %s841 = scalar_lea.sflag [#allocation4], 1
    %842 = vsyncpa %s841, 1
    %843 = vsyncpa [#allocation7], 1
    %s844 = scalar_lea.sflag [#allocation7], 1
    %845 = vsyncpa %s844, 1
    %846 = vsyncpa [#allocation5], 1
    %s847 = scalar_lea.sflag [#allocation5], 1
    %848 = vsyncpa %s847, 1

</llo_original>
